<compile_context>
chip_gen: v7x
topology: tpu7x:2x2x1
jax: 0.10.0
libtpu: 0.0.40
codegen_flags: <defaults>
</compile_context>

<pallas_src>
import jax
import jax.numpy as jnp
from jax import lax
from jax.experimental import pallas as pl
from jax.experimental.pallas import tpu as pltpu

# camera intrinsics from the reference module
_CX, _CY, _FX, _FY = 334.081, 169.808, 460.585, 460.268
_EPS = 1e-07
_LANES = 128
_VMEM_LIMIT = 32 * 1024 * 1024


def _pack_lane_scalars(vals):
    """Pack a list of (1,1) f32 values into lanes 0..k-1 of a (1,128) row."""
    lane = lax.broadcasted_iota(jnp.int32, (1, _LANES), 1)
    out = jnp.zeros((1, _LANES), jnp.float32)
    for i, v in enumerate(vals):
        out = out + jnp.where(lane == i, v, jnp.float32(0.0))
    return out


def _pick_row_tile(h, cap=64):
    """Largest multiple-of-8 divisor of h that is <= cap (else full h)."""
    if h <= cap or (h % 8) != 0:
        return h
    t = cap - (cap % 8)
    while t >= 8:
        if h % t == 0:
            return t
        t -= 8
    return h


def _pick_point_tile(n, cap):
    """Pick a multiple-of-128 point tile; prefer one that divides n (no pad)."""
    cap = max(128, (cap // 128) * 128)
    t = min(cap, (n // 128) * 128)
    while t >= 128:
        if n % t == 0:
            return t, n
        t -= 128
    t = min(cap, ((n + 127) // 128) * 128)
    return t, ((n + t - 1) // t) * t


# ---------------------------------------------------------------------------
# Kernel A: point cloud (homogeneous, mm units) + masked loss statistics
# ---------------------------------------------------------------------------
def _pcd_stats_kernel(dreal_ref, dfake_ref, stats_ref, cloud_ref):
    i = pl.program_id(0)
    dr = dreal_ref[...]
    df = dfake_ref[...]
    th, w = dr.shape

    col = lax.broadcasted_iota(jnp.int32, (th, w), 1).astype(jnp.float32)
    row = (lax.broadcasted_iota(jnp.int32, (th, w), 0) + i * th).astype(jnp.float32)
    # reciprocal multiplies + hoisted index math (shared by real & fake)
    colx = (col - _CX) * (1.0 / _FX)
    rowy = (row - _CY) * (1.0 / _FY)

    def coords(d):
        valid = (d > 0.0) & (d < 65535.0)
        # torch: z = d/1000, x = z*(c-cx)/fx, y = z*(r-cy)/fy, then cloud *= 1000
        z = d
        x = d * colx
        y = d * rowy
        x = jnp.where(x == 0.0, jnp.float32(_EPS), x)
        y = jnp.where(y == 0.0, jnp.float32(_EPS), y)
        z = jnp.where(z == 0.0, jnp.float32(_EPS), z)
        return valid, x, y, z

    vr, xr, yr, zr = coords(dr)
    vf, xf, yf, zf = coords(df)
    m = vr & vf  # joint "not NaN in real AND not NaN in fake" mask

    def masked_sq_sum(a, b):
        return jnp.sum(jnp.where(m, (a - b) ** 2, 0.0), keepdims=True)

    cnt = jnp.sum(m.astype(jnp.float32), keepdims=True)
    sx = masked_sq_sum(xr, xf)
    sy = masked_sq_sum(yr, yf)
    sz = masked_sq_sum(zr, zf)
    lzr = jnp.log(jnp.abs(jnp.where(m, zr, 1.0)))
    lzf = jnp.log(jnp.abs(jnp.where(m, zf, 1.0)))
    slog = jnp.sum(jnp.where(m, (lzr - lzf) ** 2, 0.0), keepdims=True)

    # fake cloud with NaN (invalid pixels) -> 0, as used for RANSAC
    cxp = jnp.where(vf, xf, 0.0)
    cyp = jnp.where(vf, yf, 0.0)
    czp = jnp.where(vf, zf, 0.0)
    cmax = jnp.maximum(jnp.max(cxp, keepdims=True),
                       jnp.maximum(jnp.max(cyp, keepdims=True),
                                   jnp.max(czp, keepdims=True)))

    partial = _pack_lane_scalars([cnt, sx, sy, sz, slog, cmax])
    lane = lax.broadcasted_iota(jnp.int32, (1, _LANES), 1)

    @pl.when(i == 0)
    def _():
        stats_ref[...] = jnp.where(lane == 5, -jnp.inf, 0.0).astype(jnp.float32)

    old = stats_ref[...]
    stats_ref[...] = jnp.where(lane == 5, jnp.maximum(old, partial), old + partial)

    cloud_ref[0, :, :] = cxp
    cloud_ref[1, :, :] = cyp
    cloud_ref[2, :, :] = czp
    cloud_ref[3, :, :] = jnp.ones_like(cxp)   # homogeneous row (folds d into matmul)
    zero = jnp.zeros_like(cxp)
    for r in range(4, 8):
        cloud_ref[r, :, :] = zero             # keep the padded K lanes finite


def _run_pcd_stats(d_real, d_fake, tile_h):
    h, w = d_real.shape
    return pl.pallas_call(
        _pcd_stats_kernel,
        out_shape=(jax.ShapeDtypeStruct((1, _LANES), jnp.float32),
                   jax.ShapeDtypeStruct((8, h, w), jnp.float32)),
        grid=(h // tile_h,),
        in_specs=[pl.BlockSpec((tile_h, w), lambda i: (i, 0)),
                  pl.BlockSpec((tile_h, w), lambda i: (i, 0))],
        out_specs=(pl.BlockSpec((1, _LANES), lambda i: (0, 0)),
                   pl.BlockSpec((8, tile_h, w), lambda i: (0, i, 0))),
        compiler_params=pltpu.CompilerParams(
            dimension_semantics=("arbitrary",),
            vmem_limit_bytes=_VMEM_LIMIT),
    )(d_real, d_fake)


# ---------------------------------------------------------------------------
# Kernel B: RANSAC inlier counting, tiled (planes "parallel" x points "arbitrary")
# ---------------------------------------------------------------------------
def _ransac_count_kernel(abc_ref, thr_ref, cloud_ref, counts_ref):
    @pl.when(pl.program_id(1) == 0)
    def _():
        counts_ref[...] = jnp.zeros_like(counts_ref)

    # (tile_m, 8) @ (8, tile_n) -> a*x + b*y + c*z + d  (d folded via ones row)
    num = jnp.dot(abc_ref[...], cloud_ref[...], preferred_element_type=jnp.float32)
    # per-plane threshold already contains thresh * ||n|| * cmax; NaN never counts
    inl = (jnp.abs(num) <= thr_ref[...]).astype(jnp.float32)
    # row-count via the (idle) MXU instead of an XLU cross-lane reduce
    ones = jnp.ones((inl.shape[1], counts_ref.shape[1]), jnp.float32)
    counts_ref[...] += jnp.dot(inl, ones, preferred_element_type=jnp.float32)


def _run_ransac_counts(abc8, thr_col, cloud_flat, tile_m, tile_n):
    m_pad = abc8.shape[0]
    npad = cloud_flat.shape[1]
    return pl.pallas_call(
        _ransac_count_kernel,
        out_shape=jax.ShapeDtypeStruct((m_pad, 8), jnp.float32),
        grid=(m_pad // tile_m, npad // tile_n),
        in_specs=[
            pl.BlockSpec((tile_m, 8), lambda i, j: (i, 0)),
            pl.BlockSpec((tile_m, 1), lambda i, j: (i, 0)),
            pl.BlockSpec((8, tile_n), lambda i, j: (0, j)),
        ],
        out_specs=pl.BlockSpec((tile_m, 8), lambda i, j: (i, 0)),
        compiler_params=pltpu.CompilerParams(
            dimension_semantics=("parallel", "arbitrary"),
            vmem_limit_bytes=_VMEM_LIMIT),
    )(abc8, thr_col, cloud_flat)


# ---------------------------------------------------------------------------
# Kernel C: best-plane inlier stats, lane-dense over (3, tile_h, W) cloud tiles
# ---------------------------------------------------------------------------
def _plane_stats_kernel(par_ref, cloud_ref, out_ref):
    i = pl.program_id(0)
    par = par_ref[...]                        # (1, 128) packed scalars
    a, b, c = par[:, 0:1], par[:, 1:2], par[:, 2:3]
    dpr, thr = par[:, 3:4], par[:, 4:5]       # d*cmax, thresh*||n||*cmax
    m0, m1, m2 = par[:, 5:6], par[:, 6:7], par[:, 7:8]

    x = cloud_ref[0]                          # (tile_h, W), full-width vregs
    y = cloud_ref[1]
    z = cloud_ref[2]

    num = a * x + b * y + c * z + dpr
    inl = jnp.abs(num) <= thr
    zp = x * m0 + y * m1 + z * m2             # rotated z (un-normalized, un-shifted)

    cnt = jnp.sum(inl.astype(jnp.float32), keepdims=True)
    szp = jnp.sum(jnp.where(inl, zp, 0.0), keepdims=True)
    mx = jnp.max(jnp.where(inl, zp, -jnp.inf), keepdims=True)
    mn = jnp.min(jnp.where(inl, zp, jnp.inf), keepdims=True)

    partial = _pack_lane_scalars([cnt, szp, mx, mn])
    lane = lax.broadcasted_iota(jnp.int32, (1, _LANES), 1)

    @pl.when(i == 0)
    def _():
        out_ref[...] = jnp.where(lane == 2, -jnp.inf,
                                 jnp.where(lane == 3, jnp.inf, 0.0)).astype(jnp.float32)

    old = out_ref[...]
    out_ref[...] = jnp.where(lane == 2, jnp.maximum(old, partial),
                             jnp.where(lane == 3, jnp.minimum(old, partial),
                                       old + partial))


def _run_plane_stats(params_row, cloud, tile_h):
    _, h, w = cloud.shape
    return pl.pallas_call(
        _plane_stats_kernel,
        out_shape=jax.ShapeDtypeStruct((1, _LANES), jnp.float32),
        grid=(h // tile_h,),
        in_specs=[pl.BlockSpec((1, _LANES), lambda i: (0, 0)),
                  pl.BlockSpec((3, tile_h, w), lambda i: (0, i, 0))],
        out_specs=pl.BlockSpec((1, _LANES), lambda i: (0, 0)),
        compiler_params=pltpu.CompilerParams(
            dimension_semantics=("arbitrary",),
            vmem_limit_bytes=_VMEM_LIMIT),
    )(params_row, cloud)


# ---------------------------------------------------------------------------
# Full forward pass (glue in plain JAX)
# ---------------------------------------------------------------------------
def ddd_depth_diff(fake, real, epoch, show_image=False, *, key,
                   thresh=0.025, min_points=5000, max_iteration=1000,
                   tile_m=256, tile_n=4096, row_tile_cap=64):
    del show_image  # only used for plotting in the original code
    if fake.shape != real.shape:
        _, _, h, w = real.shape
        # bilinear, half-pixel centers (align_corners=False), like F.interpolate
        fake = jax.image.resize(fake, fake.shape[:2] + (h, w), method="bilinear")

    def _depth_channel(img):  # img: (C, H, W), mirrors point_cloud()
        return img[2] if img.shape[0] == 3 else img[0]

    d_fake = _depth_channel(fake[0]).astype(jnp.float32)
    d_real = d_fake if epoch > 24 else _depth_channel(real[0]).astype(jnp.float32)

    h, w = d_real.shape
    n = h * w
    tile_h = _pick_row_tile(h, row_tile_cap)

    stats, cloud = _run_pcd_stats(d_real, d_fake, tile_h)
    cnt = stats[0, 0]
    lossX = jnp.sqrt(stats[0, 1] / cnt)
    lossY = jnp.sqrt(stats[0, 2] / cnt)
    lossZ = jnp.sqrt(stats[0, 3] / cnt)
    RMSE_log = 10000.0 * jnp.sqrt(stats[0, 4] / cnt)
    loss17 = RMSE_log * jnp.abs(
        10.0 * (3.0 - jnp.exp(lossX) - jnp.exp(lossY) - jnp.exp(lossZ)))
    cmax = stats[0, 5]

    # ---- RANSAC candidate planes: fit on the UNNORMALIZED mm cloud; the /cmax
    #      normalization and 1/||n|| are folded into d' and a per-plane threshold.
    idx = jax.random.randint(key, (max_iteration, 3), 0, n)   # with replacement
    pts3 = cloud.reshape(8, n)[:3]                            # (3, N) view, no repack
    samp = jnp.take(pts3, idx, axis=1)                        # (3, M, 3)
    p0, p1, p2 = samp[:, :, 0], samp[:, :, 1], samp[:, :, 2]  # each (3, M)
    va = p1 - p0
    vb = p2 - p0
    cxn = va[1] * vb[2] - va[2] * vb[1]
    cyn = va[2] * vb[0] - va[0] * vb[2]
    czn = va[0] * vb[1] - va[1] * vb[0]
    cn = jnp.sqrt(cxn * cxn + cyn * cyn + czn * czn)
    a_arr = cxn / cn          # degenerate triples -> NaN -> zero inliers
    b_arr = cyn / cn
    c_arr = czn / cn
    dprime = -(a_arr * p1[0] + b_arr * p1[1] + c_arr * p1[2])  # == d_normalized * cmax
    nrm = jnp.sqrt(a_arr ** 2 + b_arr ** 2 + c_arr ** 2)
    thr_arr = jnp.float32(thresh) * nrm * cmax

    tile_m = max(8, (tile_m // 8) * 8)
    m_pad = ((max_iteration + tile_m - 1) // tile_m) * tile_m
    abc8 = jnp.zeros((m_pad, 8), jnp.float32)
    abc8 = (abc8.at[:max_iteration, 0].set(a_arr)
                 .at[:max_iteration, 1].set(b_arr)
                 .at[:max_iteration, 2].set(c_arr)
                 .at[:max_iteration, 3].set(dprime))
    thr_col = jnp.full((m_pad, 1), -1.0, jnp.float32)
    thr_col = thr_col.at[:max_iteration, 0].set(thr_arr)

    tile_n_eff, npad = _pick_point_tile(n, tile_n)
    cloud_flat = cloud.reshape(8, n)
    if npad > n:  # NaN point padding never counts as inlier
        cloud_flat = jnp.pad(cloud_flat, ((0, 0), (0, npad - n)),
                             constant_values=float("nan"))

    counts = _run_ransac_counts(abc8, thr_col, cloud_flat, tile_m, tile_n_eff)[:, 0]
    # TODO(synk): the torch code gates on minPoints and crashes when no candidate
    # exceeds it; we always take the first argmax, matching torch whenever the gate passes.
    del min_points
    best = jnp.argmax(counts[:max_iteration])

    a = a_arr[best]
    b = b_arr[best]
    c = c_arr[best]
    dpr = dprime[best]
    thr_b = jnp.float32(thresh) * nrm[best] * cmax
    s2 = a * a + b * b + c * c
    cos_t = c / jnp.sqrt(s2)
    sin_t = jnp.sqrt((a * a + b * b) / s2)
    ab = jnp.sqrt(a * a + b * b)
    u1 = b / ab
    u2 = -a / ab
    m0 = -u2 * sin_t          # third row of R (== third column of R.T)
    m1 = u1 * sin_t
    m2 = cos_t

    params = jnp.zeros((1, _LANES), jnp.float32)
    for k_, v in enumerate([a, b, c, dpr, thr_b, m0, m1, m2]):
        params = params.at[0, k_].set(v)

    pstats = _run_plane_stats(params, cloud, tile_h)
    n_inl = pstats[0, 0]
    mean_zp = pstats[0, 1] / n_inl
    zmax = pstats[0, 2]
    zmin = pstats[0, 3]
    # mean|z'-max| = max - mean, mean|z'-min| = mean - min over the inliers; the
    # rigid (d/c)*cos shift cancels and the 1/cmax scale only matters in the ==0 guard.
    below = (zmax - mean_zp) / cmax
    above = (mean_zp - zmin) / cmax
    above = jnp.where(below + above == 0.0, jnp.float32(0.001), above)
    plane_mean_dist_grad = 1000.0 * below / (below + above)

    loss_curv = loss17 + plane_mean_dist_grad / loss17
    delta = [RMSE_log, lossX, lossY, lossZ, plane_mean_dist_grad, loss17]
    return delta, loss_curv


if __name__ == "__main__":
    key = jax.random.PRNGKey(0)
    k_real, k_fake, k_ransac = jax.random.split(key, 3)

    # NCHW inputs, like the PyTorch module (depth in "mm", batch=2, channels=1)
    B, C, H, W = 2, 1, 16, 16
    rr = jnp.arange(H, dtype=jnp.float32)[:, None]
    cc = jnp.arange(W, dtype=jnp.float32)[None, :]
    base = 1000.0 + 20.0 * rr + 10.0 * cc
    real = base[None, None] + 0.5 * jax.random.normal(k_real, (B, C, H, W))
    fake = base[None, None] + 0.5 * jax.random.normal(k_fake, (B, C, H, W))
    # a couple of invalid (zero-depth) pixels to exercise the valid masking
    real = real.at[0, 0, 0, 0].set(0.0)
    fake = fake.at[0, 0, 3, 5].set(0.0)

    delta, loss_curv = ddd_depth_diff(
        fake, real, epoch=1, show_image=False, key=k_ransac,
        thresh=0.025, min_points=5, max_iteration=1000)

    jax.block_until_ready((delta, loss_curv))
    print("KERNEL_OK")
</pallas_src>

<mosaic_0001>
module attributes {stable_mosaic.version = 11 : i64} {
  func.func @_pcd_stats_kernel(%arg0: i32, %arg1: memref<16x16xf32, #tpu.memory_space<vmem>>, %arg2: memref<16x16xf32, #tpu.memory_space<vmem>>, %arg3: memref<1x128xf32, #tpu.memory_space<vmem>>, %arg4: memref<8x16x16xf32, #tpu.memory_space<vmem>>) attributes {dimension_semantics = [#tpu.dimension_semantics<arbitrary>], iteration_bounds = array<i64: 1>, scalar_prefetch = 0 : i64, scratch_operands = 0 : i64, tpu.core_type = #tpu.core_type<tc>, window_params = [{transform_indices = @transform_0, window_bounds = array<i64: 16, 16>}, {transform_indices = @transform_1, window_bounds = array<i64: 16, 16>}, {pipeline_mode = #tpu.pipeline_mode<synchronous>, transform_indices = @transform_2, window_bounds = array<i64: 1, 128>}, {transform_indices = @transform_3, window_bounds = array<i64: 8, 16, 16>}]} {
    %c0 = arith.constant 0 : index
    %c0_0 = arith.constant 0 : index
    %0 = vector.load %arg1[%c0, %c0_0] : memref<16x16xf32, #tpu.memory_space<vmem>>, vector<16x16xf32>
    %c0_1 = arith.constant 0 : index
    %c0_2 = arith.constant 0 : index
    %1 = vector.load %arg2[%c0_1, %c0_2] : memref<16x16xf32, #tpu.memory_space<vmem>>, vector<16x16xf32>
    %2 = tpu.iota {dimensions = array<i32: 1>} : vector<16x16xi32>
    %3 = arith.sitofp %2 : vector<16x16xi32> to vector<16x16xf32>
    %4 = tpu.iota {dimensions = array<i32: 0>} : vector<16x16xi32>
    %c16_i32 = arith.constant 16 : i32
    %5 = arith.muli %arg0, %c16_i32 : i32
    %6 = vector.broadcast %5 : i32 to vector<16x16xi32>
    %7 = arith.addi %4, %6 : vector<16x16xi32>
    %8 = arith.sitofp %7 : vector<16x16xi32> to vector<16x16xf32>
    %cst = arith.constant 3.340810e+02 : f32
    %9 = vector.broadcast %cst : f32 to vector<16x16xf32>
    %10 = arith.subf %3, %9 : vector<16x16xf32>
    %cst_3 = arith.constant 0.00217115181 : f32
    %11 = vector.broadcast %cst_3 : f32 to vector<16x16xf32>
    %12 = arith.mulf %10, %11 : vector<16x16xf32>
    %cst_4 = arith.constant 1.698080e+02 : f32
    %13 = vector.broadcast %cst_4 : f32 to vector<16x16xf32>
    %14 = arith.subf %8, %13 : vector<16x16xf32>
    %cst_5 = arith.constant 0.00217264728 : f32
    %15 = vector.broadcast %cst_5 : f32 to vector<16x16xf32>
    %16 = arith.mulf %14, %15 : vector<16x16xf32>
    %cst_6 = arith.constant 0.000000e+00 : f32
    %17 = vector.broadcast %cst_6 : f32 to vector<16x16xf32>
    %18 = arith.cmpf ogt, %0, %17 : vector<16x16xf32>
    %cst_7 = arith.constant 6.553500e+04 : f32
    %19 = vector.broadcast %cst_7 : f32 to vector<16x16xf32>
    %20 = arith.cmpf olt, %0, %19 : vector<16x16xf32>
    %21 = arith.andi %18, %20 : vector<16x16xi1>
    %22 = arith.mulf %0, %12 : vector<16x16xf32>
    %23 = arith.mulf %0, %16 : vector<16x16xf32>
    %cst_8 = arith.constant 0.000000e+00 : f32
    %24 = vector.broadcast %cst_8 : f32 to vector<16x16xf32>
    %25 = arith.cmpf oeq, %22, %24 : vector<16x16xf32>
    %cst_9 = arith.constant 1.000000e-07 : f32
    %26 = vector.broadcast %cst_9 : f32 to vector<16x16xf32>
    %27 = arith.select %25, %26, %22 : vector<16x16xi1>, vector<16x16xf32>
    %cst_10 = arith.constant 0.000000e+00 : f32
    %28 = vector.broadcast %cst_10 : f32 to vector<16x16xf32>
    %29 = arith.cmpf oeq, %23, %28 : vector<16x16xf32>
    %cst_11 = arith.constant 1.000000e-07 : f32
    %30 = vector.broadcast %cst_11 : f32 to vector<16x16xf32>
    %31 = arith.select %29, %30, %23 : vector<16x16xi1>, vector<16x16xf32>
    %cst_12 = arith.constant 0.000000e+00 : f32
    %32 = vector.broadcast %cst_12 : f32 to vector<16x16xf32>
    %33 = arith.cmpf oeq, %0, %32 : vector<16x16xf32>
    %cst_13 = arith.constant 1.000000e-07 : f32
    %34 = vector.broadcast %cst_13 : f32 to vector<16x16xf32>
    %35 = arith.select %33, %34, %0 : vector<16x16xi1>, vector<16x16xf32>
    %cst_14 = arith.constant 0.000000e+00 : f32
    %36 = vector.broadcast %cst_14 : f32 to vector<16x16xf32>
    %37 = arith.cmpf ogt, %1, %36 : vector<16x16xf32>
    %cst_15 = arith.constant 6.553500e+04 : f32
    %38 = vector.broadcast %cst_15 : f32 to vector<16x16xf32>
    %39 = arith.cmpf olt, %1, %38 : vector<16x16xf32>
    %40 = arith.andi %37, %39 : vector<16x16xi1>
    %41 = arith.mulf %1, %12 : vector<16x16xf32>
    %42 = arith.mulf %1, %16 : vector<16x16xf32>
    %cst_16 = arith.constant 0.000000e+00 : f32
    %43 = vector.broadcast %cst_16 : f32 to vector<16x16xf32>
    %44 = arith.cmpf oeq, %41, %43 : vector<16x16xf32>
    %cst_17 = arith.constant 1.000000e-07 : f32
    %45 = vector.broadcast %cst_17 : f32 to vector<16x16xf32>
    %46 = arith.select %44, %45, %41 : vector<16x16xi1>, vector<16x16xf32>
    %cst_18 = arith.constant 0.000000e+00 : f32
    %47 = vector.broadcast %cst_18 : f32 to vector<16x16xf32>
    %48 = arith.cmpf oeq, %42, %47 : vector<16x16xf32>
    %cst_19 = arith.constant 1.000000e-07 : f32
    %49 = vector.broadcast %cst_19 : f32 to vector<16x16xf32>
    %50 = arith.select %48, %49, %42 : vector<16x16xi1>, vector<16x16xf32>
    %cst_20 = arith.constant 0.000000e+00 : f32
    %51 = vector.broadcast %cst_20 : f32 to vector<16x16xf32>
    %52 = arith.cmpf oeq, %1, %51 : vector<16x16xf32>
    %cst_21 = arith.constant 1.000000e-07 : f32
    %53 = vector.broadcast %cst_21 : f32 to vector<16x16xf32>
    %54 = arith.select %52, %53, %1 : vector<16x16xi1>, vector<16x16xf32>
    %55 = arith.andi %21, %40 : vector<16x16xi1>
    %56 = arith.extui %55 : vector<16x16xi1> to vector<16x16xi32>
    %57 = arith.sitofp %56 : vector<16x16xi32> to vector<16x16xf32>
    %58 = vector.shape_cast %57 : vector<16x16xf32> to vector<1x16x16xf32>
    %cst_22 = arith.constant dense<0.000000e+00> : vector<1xf32>
    %59 = vector.multi_reduction <add>, %58, %cst_22 [1, 2] : vector<1x16x16xf32> to vector<1xf32>
    %60 = vector.shape_cast %59 : vector<1xf32> to vector<1x1x1xf32>
    %61 = vector.extract %60[0, 0, 0] : f32 from vector<1x1x1xf32>
    %62 = vector.broadcast %61 : f32 to vector<1x1xf32>
    %63 = arith.subf %27, %46 : vector<16x16xf32>
    %64 = arith.mulf %63, %63 : vector<16x16xf32>
    %cst_23 = arith.constant 0.000000e+00 : f32
    %65 = vector.broadcast %cst_23 : f32 to vector<16x16xf32>
    %66 = arith.select %55, %64, %65 : vector<16x16xi1>, vector<16x16xf32>
    %67 = vector.shape_cast %66 : vector<16x16xf32> to vector<1x16x16xf32>
    %cst_24 = arith.constant dense<0.000000e+00> : vector<1xf32>
    %68 = vector.multi_reduction <add>, %67, %cst_24 [1, 2] : vector<1x16x16xf32> to vector<1xf32>
    %69 = vector.shape_cast %68 : vector<1xf32> to vector<1x1x1xf32>
    %70 = vector.extract %69[0, 0, 0] : f32 from vector<1x1x1xf32>
    %71 = vector.broadcast %70 : f32 to vector<1x1xf32>
    %72 = arith.subf %31, %50 : vector<16x16xf32>
    %73 = arith.mulf %72, %72 : vector<16x16xf32>
    %cst_25 = arith.constant 0.000000e+00 : f32
    %74 = vector.broadcast %cst_25 : f32 to vector<16x16xf32>
    %75 = arith.select %55, %73, %74 : vector<16x16xi1>, vector<16x16xf32>
    %76 = vector.shape_cast %75 : vector<16x16xf32> to vector<1x16x16xf32>
    %cst_26 = arith.constant dense<0.000000e+00> : vector<1xf32>
    %77 = vector.multi_reduction <add>, %76, %cst_26 [1, 2] : vector<1x16x16xf32> to vector<1xf32>
    %78 = vector.shape_cast %77 : vector<1xf32> to vector<1x1x1xf32>
    %79 = vector.extract %78[0, 0, 0] : f32 from vector<1x1x1xf32>
    %80 = vector.broadcast %79 : f32 to vector<1x1xf32>
    %81 = arith.subf %35, %54 : vector<16x16xf32>
    %82 = arith.mulf %81, %81 : vector<16x16xf32>
    %cst_27 = arith.constant 0.000000e+00 : f32
    %83 = vector.broadcast %cst_27 : f32 to vector<16x16xf32>
    %84 = arith.select %55, %82, %83 : vector<16x16xi1>, vector<16x16xf32>
    %85 = vector.shape_cast %84 : vector<16x16xf32> to vector<1x16x16xf32>
    %cst_28 = arith.constant dense<0.000000e+00> : vector<1xf32>
    %86 = vector.multi_reduction <add>, %85, %cst_28 [1, 2] : vector<1x16x16xf32> to vector<1xf32>
    %87 = vector.shape_cast %86 : vector<1xf32> to vector<1x1x1xf32>
    %88 = vector.extract %87[0, 0, 0] : f32 from vector<1x1x1xf32>
    %89 = vector.broadcast %88 : f32 to vector<1x1xf32>
    %cst_29 = arith.constant 1.000000e+00 : f32
    %90 = vector.broadcast %cst_29 : f32 to vector<16x16xf32>
    %91 = arith.select %55, %35, %90 : vector<16x16xi1>, vector<16x16xf32>
    %92 = math.absf %91 : vector<16x16xf32>
    %93 = math.log %92 : vector<16x16xf32>
    %cst_30 = arith.constant 1.000000e+00 : f32
    %94 = vector.broadcast %cst_30 : f32 to vector<16x16xf32>
    %95 = arith.select %55, %54, %94 : vector<16x16xi1>, vector<16x16xf32>
    %96 = math.absf %95 : vector<16x16xf32>
    %97 = math.log %96 : vector<16x16xf32>
    %98 = arith.subf %93, %97 : vector<16x16xf32>
    %99 = arith.mulf %98, %98 : vector<16x16xf32>
    %cst_31 = arith.constant 0.000000e+00 : f32
    %100 = vector.broadcast %cst_31 : f32 to vector<16x16xf32>
    %101 = arith.select %55, %99, %100 : vector<16x16xi1>, vector<16x16xf32>
    %102 = vector.shape_cast %101 : vector<16x16xf32> to vector<1x16x16xf32>
    %cst_32 = arith.constant dense<0.000000e+00> : vector<1xf32>
    %103 = vector.multi_reduction <add>, %102, %cst_32 [1, 2] : vector<1x16x16xf32> to vector<1xf32>
    %104 = vector.shape_cast %103 : vector<1xf32> to vector<1x1x1xf32>
    %105 = vector.extract %104[0, 0, 0] : f32 from vector<1x1x1xf32>
    %106 = vector.broadcast %105 : f32 to vector<1x1xf32>
    %cst_33 = arith.constant 0.000000e+00 : f32
    %107 = vector.broadcast %cst_33 : f32 to vector<16x16xf32>
    %108 = arith.select %40, %46, %107 : vector<16x16xi1>, vector<16x16xf32>
    %cst_34 = arith.constant 0.000000e+00 : f32
    %109 = vector.broadcast %cst_34 : f32 to vector<16x16xf32>
    %110 = arith.select %40, %50, %109 : vector<16x16xi1>, vector<16x16xf32>
    %cst_35 = arith.constant 0.000000e+00 : f32
    %111 = vector.broadcast %cst_35 : f32 to vector<16x16xf32>
    %112 = arith.select %40, %54, %111 : vector<16x16xi1>, vector<16x16xf32>
    %113 = vector.shape_cast %108 : vector<16x16xf32> to vector<1x16x16xf32>
    %cst_36 = arith.constant dense<0xFF800000> : vector<1xf32>
    %114 = vector.multi_reduction <maximumf>, %113, %cst_36 [1, 2] : vector<1x16x16xf32> to vector<1xf32>
    %115 = vector.shape_cast %114 : vector<1xf32> to vector<1x1x1xf32>
    %116 = vector.extract %115[0, 0, 0] : f32 from vector<1x1x1xf32>
    %117 = vector.broadcast %116 : f32 to vector<1x1xf32>
    %118 = vector.shape_cast %110 : vector<16x16xf32> to vector<1x16x16xf32>
    %cst_37 = arith.constant dense<0xFF800000> : vector<1xf32>
    %119 = vector.multi_reduction <maximumf>, %118, %cst_37 [1, 2] : vector<1x16x16xf32> to vector<1xf32>
    %120 = vector.shape_cast %119 : vector<1xf32> to vector<1x1x1xf32>
    %121 = vector.extract %120[0, 0, 0] : f32 from vector<1x1x1xf32>
    %122 = vector.broadcast %121 : f32 to vector<1x1xf32>
    %123 = vector.shape_cast %112 : vector<16x16xf32> to vector<1x16x16xf32>
    %cst_38 = arith.constant dense<0xFF800000> : vector<1xf32>
    %124 = vector.multi_reduction <maximumf>, %123, %cst_38 [1, 2] : vector<1x16x16xf32> to vector<1xf32>
    %125 = vector.shape_cast %124 : vector<1xf32> to vector<1x1x1xf32>
    %126 = vector.extract %125[0, 0, 0] : f32 from vector<1x1x1xf32>
    %127 = vector.broadcast %126 : f32 to vector<1x1xf32>
    %128 = arith.maximumf %122, %127 : vector<1x1xf32>
    %129 = arith.maximumf %117, %128 : vector<1x1xf32>
    %130 = tpu.iota {dimensions = array<i32: 1>} : vector<1x128xi32>
    %cst_39 = arith.constant 0.000000e+00 : f32
    %131 = vector.broadcast %cst_39 : f32 to vector<1x128xf32>
    %c0_i32 = arith.constant 0 : i32
    %132 = vector.broadcast %c0_i32 : i32 to vector<1x128xi32>
    %133 = arith.cmpi eq, %130, %132 : vector<1x128xi32>
    %cst_40 = arith.constant 0.000000e+00 : f32
    %134 = vector.shape_cast %62 : vector<1x1xf32> to vector<1x1xf32>
    %135 = vector.broadcast %134 : vector<1x1xf32> to vector<1x128xf32>
    %136 = vector.broadcast %cst_40 : f32 to vector<1x128xf32>
    %137 = arith.select %133, %135, %136 : vector<1x128xi1>, vector<1x128xf32>
    %138 = arith.addf %131, %137 : vector<1x128xf32>
    %c1_i32 = arith.constant 1 : i32
    %139 = vector.broadcast %c1_i32 : i32 to vector<1x128xi32>
    %140 = arith.cmpi eq, %130, %139 : vector<1x128xi32>
    %cst_41 = arith.constant 0.000000e+00 : f32
    %141 = vector.shape_cast %71 : vector<1x1xf32> to vector<1x1xf32>
    %142 = vector.broadcast %141 : vector<1x1xf32> to vector<1x128xf32>
    %143 = vector.broadcast %cst_41 : f32 to vector<1x128xf32>
    %144 = arith.select %140, %142, %143 : vector<1x128xi1>, vector<1x128xf32>
    %145 = arith.addf %138, %144 : vector<1x128xf32>
    %c2_i32 = arith.constant 2 : i32
    %146 = vector.broadcast %c2_i32 : i32 to vector<1x128xi32>
    %147 = arith.cmpi eq, %130, %146 : vector<1x128xi32>
    %cst_42 = arith.constant 0.000000e+00 : f32
    %148 = vector.shape_cast %80 : vector<1x1xf32> to vector<1x1xf32>
    %149 = vector.broadcast %148 : vector<1x1xf32> to vector<1x128xf32>
    %150 = vector.broadcast %cst_42 : f32 to vector<1x128xf32>
    %151 = arith.select %147, %149, %150 : vector<1x128xi1>, vector<1x128xf32>
    %152 = arith.addf %145, %151 : vector<1x128xf32>
    %c3_i32 = arith.constant 3 : i32
    %153 = vector.broadcast %c3_i32 : i32 to vector<1x128xi32>
    %154 = arith.cmpi eq, %130, %153 : vector<1x128xi32>
    %cst_43 = arith.constant 0.000000e+00 : f32
    %155 = vector.shape_cast %89 : vector<1x1xf32> to vector<1x1xf32>
    %156 = vector.broadcast %155 : vector<1x1xf32> to vector<1x128xf32>
    %157 = vector.broadcast %cst_43 : f32 to vector<1x128xf32>
    %158 = arith.select %154, %156, %157 : vector<1x128xi1>, vector<1x128xf32>
    %159 = arith.addf %152, %158 : vector<1x128xf32>
    %c4_i32 = arith.constant 4 : i32
    %160 = vector.broadcast %c4_i32 : i32 to vector<1x128xi32>
    %161 = arith.cmpi eq, %130, %160 : vector<1x128xi32>
    %cst_44 = arith.constant 0.000000e+00 : f32
    %162 = vector.shape_cast %106 : vector<1x1xf32> to vector<1x1xf32>
    %163 = vector.broadcast %162 : vector<1x1xf32> to vector<1x128xf32>
    %164 = vector.broadcast %cst_44 : f32 to vector<1x128xf32>
    %165 = arith.select %161, %163, %164 : vector<1x128xi1>, vector<1x128xf32>
    %166 = arith.addf %159, %165 : vector<1x128xf32>
    %c5_i32 = arith.constant 5 : i32
    %167 = vector.broadcast %c5_i32 : i32 to vector<1x128xi32>
    %168 = arith.cmpi eq, %130, %167 : vector<1x128xi32>
    %cst_45 = arith.constant 0.000000e+00 : f32
    %169 = vector.shape_cast %129 : vector<1x1xf32> to vector<1x1xf32>
    %170 = vector.broadcast %169 : vector<1x1xf32> to vector<1x128xf32>
    %171 = vector.broadcast %cst_45 : f32 to vector<1x128xf32>
    %172 = arith.select %168, %170, %171 : vector<1x128xi1>, vector<1x128xf32>
    %173 = arith.addf %166, %172 : vector<1x128xf32>
    %174 = tpu.iota {dimensions = array<i32: 1>} : vector<1x128xi32>
    %c0_i32_46 = arith.constant 0 : i32
    %175 = arith.cmpi eq, %arg0, %c0_i32_46 : i32
    %176 = arith.extui %175 : i1 to i32
    %c0_i32_47 = arith.constant 0 : i32
    %177 = arith.cmpi ne, %176, %c0_i32_47 : i32
    scf.if %177 {
      %c5_i32_72 = arith.constant 5 : i32
      %211 = vector.broadcast %c5_i32_72 : i32 to vector<1x128xi32>
      %212 = arith.cmpi eq, %174, %211 : vector<1x128xi32>
      %cst_73 = arith.constant 0xFF800000 : f32
      %cst_74 = arith.constant 0.000000e+00 : f32
      %213 = vector.broadcast %cst_73 : f32 to vector<1x128xf32>
      %214 = vector.broadcast %cst_74 : f32 to vector<1x128xf32>
      %215 = arith.select %212, %213, %214 : vector<1x128xi1>, vector<1x128xf32>
      %c0_75 = arith.constant 0 : index
      %c0_76 = arith.constant 0 : index
      %216 = vector.load %arg3[%c0_75, %c0_76] : memref<1x128xf32, #tpu.memory_space<vmem>>, vector<1x128xf32>
      tpu.vector_store %arg3[%c0_75, %c0_76], %215 {strides = array<i32>} : memref<1x128xf32, #tpu.memory_space<vmem>>, vector<1x128xf32>,
    } else {
    }
    %c0_48 = arith.constant 0 : index
    %c0_49 = arith.constant 0 : index
    %178 = vector.load %arg3[%c0_48, %c0_49] : memref<1x128xf32, #tpu.memory_space<vmem>>, vector<1x128xf32>
    %c5_i32_50 = arith.constant 5 : i32
    %179 = vector.broadcast %c5_i32_50 : i32 to vector<1x128xi32>
    %180 = arith.cmpi eq, %174, %179 : vector<1x128xi32>
    %181 = arith.maximumf %178, %173 : vector<1x128xf32>
    %182 = arith.addf %178, %173 : vector<1x128xf32>
    %183 = arith.select %180, %181, %182 : vector<1x128xi1>, vector<1x128xf32>
    %c0_51 = arith.constant 0 : index
    %c0_52 = arith.constant 0 : index
    %184 = vector.load %arg3[%c0_51, %c0_52] : memref<1x128xf32, #tpu.memory_space<vmem>>, vector<1x128xf32>
    tpu.vector_store %arg3[%c0_51, %c0_52], %183 {strides = array<i32>} : memref<1x128xf32, #tpu.memory_space<vmem>>, vector<1x128xf32>,
    %c0_53 = arith.constant 0 : index
    %c0_54 = arith.constant 0 : index
    %c0_55 = arith.constant 0 : index
    %185 = vector.load %arg4[%c0_53, %c0_54, %c0_55] : memref<8x16x16xf32, #tpu.memory_space<vmem>>, vector<1x16x16xf32>
    %186 = vector.shape_cast %185 : vector<1x16x16xf32> to vector<16x16xf32>
    %187 = vector.shape_cast %108 : vector<16x16xf32> to vector<1x16x16xf32>
    tpu.vector_store %arg4[%c0_53, %c0_54, %c0_55], %187 {strides = array<i32>} : memref<8x16x16xf32, #tpu.memory_space<vmem>>, vector<1x16x16xf32>,
    %c1 = arith.constant 1 : index
    %c0_56 = arith.constant 0 : index
    %c0_57 = arith.constant 0 : index
    %188 = vector.load %arg4[%c1, %c0_56, %c0_57] : memref<8x16x16xf32, #tpu.memory_space<vmem>>, vector<1x16x16xf32>
    %189 = vector.shape_cast %188 : vector<1x16x16xf32> to vector<16x16xf32>
    %190 = vector.shape_cast %110 : vector<16x16xf32> to vector<1x16x16xf32>
    tpu.vector_store %arg4[%c1, %c0_56, %c0_57], %190 {strides = array<i32>} : memref<8x16x16xf32, #tpu.memory_space<vmem>>, vector<1x16x16xf32>,
    %c2 = arith.constant 2 : index
    %c0_58 = arith.constant 0 : index
    %c0_59 = arith.constant 0 : index
    %191 = vector.load %arg4[%c2, %c0_58, %c0_59] : memref<8x16x16xf32, #tpu.memory_space<vmem>>, vector<1x16x16xf32>
    %192 = vector.shape_cast %191 : vector<1x16x16xf32> to vector<16x16xf32>
    %193 = vector.shape_cast %112 : vector<16x16xf32> to vector<1x16x16xf32>
    tpu.vector_store %arg4[%c2, %c0_58, %c0_59], %193 {strides = array<i32>} : memref<8x16x16xf32, #tpu.memory_space<vmem>>, vector<1x16x16xf32>,
    %cst_60 = arith.constant 1.000000e+00 : f32
    %194 = vector.broadcast %cst_60 : f32 to vector<16x16xf32>
    %c3 = arith.constant 3 : index
    %c0_61 = arith.constant 0 : index
    %c0_62 = arith.constant 0 : index
    %195 = vector.load %arg4[%c3, %c0_61, %c0_62] : memref<8x16x16xf32, #tpu.memory_space<vmem>>, vector<1x16x16xf32>
    %196 = vector.shape_cast %195 : vector<1x16x16xf32> to vector<16x16xf32>
    %197 = vector.shape_cast %194 : vector<16x16xf32> to vector<1x16x16xf32>
    tpu.vector_store %arg4[%c3, %c0_61, %c0_62], %197 {strides = array<i32>} : memref<8x16x16xf32, #tpu.memory_space<vmem>>, vector<1x16x16xf32>,
    %cst_63 = arith.constant 0.000000e+00 : f32
    %198 = vector.broadcast %cst_63 : f32 to vector<16x16xf32>
    %c4 = arith.constant 4 : index
    %c0_64 = arith.constant 0 : index
    %c0_65 = arith.constant 0 : index
    %199 = vector.load %arg4[%c4, %c0_64, %c0_65] : memref<8x16x16xf32, #tpu.memory_space<vmem>>, vector<1x16x16xf32>
    %200 = vector.shape_cast %199 : vector<1x16x16xf32> to vector<16x16xf32>
    %201 = vector.shape_cast %198 : vector<16x16xf32> to vector<1x16x16xf32>
    tpu.vector_store %arg4[%c4, %c0_64, %c0_65], %201 {strides = array<i32>} : memref<8x16x16xf32, #tpu.memory_space<vmem>>, vector<1x16x16xf32>,
    %c5 = arith.constant 5 : index
    %c0_66 = arith.constant 0 : index
    %c0_67 = arith.constant 0 : index
    %202 = vector.load %arg4[%c5, %c0_66, %c0_67] : memref<8x16x16xf32, #tpu.memory_space<vmem>>, vector<1x16x16xf32>
    %203 = vector.shape_cast %202 : vector<1x16x16xf32> to vector<16x16xf32>
    %204 = vector.shape_cast %198 : vector<16x16xf32> to vector<1x16x16xf32>
    tpu.vector_store %arg4[%c5, %c0_66, %c0_67], %204 {strides = array<i32>} : memref<8x16x16xf32, #tpu.memory_space<vmem>>, vector<1x16x16xf32>,
    %c6 = arith.constant 6 : index
    %c0_68 = arith.constant 0 : index
    %c0_69 = arith.constant 0 : index
    %205 = vector.load %arg4[%c6, %c0_68, %c0_69] : memref<8x16x16xf32, #tpu.memory_space<vmem>>, vector<1x16x16xf32>
    %206 = vector.shape_cast %205 : vector<1x16x16xf32> to vector<16x16xf32>
    %207 = vector.shape_cast %198 : vector<16x16xf32> to vector<1x16x16xf32>
    tpu.vector_store %arg4[%c6, %c0_68, %c0_69], %207 {strides = array<i32>} : memref<8x16x16xf32, #tpu.memory_space<vmem>>, vector<1x16x16xf32>,
    %c7 = arith.constant 7 : index
    %c0_70 = arith.constant 0 : index
    %c0_71 = arith.constant 0 : index
    %208 = vector.load %arg4[%c7, %c0_70, %c0_71] : memref<8x16x16xf32, #tpu.memory_space<vmem>>, vector<1x16x16xf32>
    %209 = vector.shape_cast %208 : vector<1x16x16xf32> to vector<16x16xf32>
    %210 = vector.shape_cast %198 : vector<16x16xf32> to vector<1x16x16xf32>
    tpu.vector_store %arg4[%c7, %c0_70, %c0_71], %210 {strides = array<i32>} : memref<8x16x16xf32, #tpu.memory_space<vmem>>, vector<1x16x16xf32>,
    return
  }
  func.func @transform_0(%arg0: i32) -> (i32, i32) {
    %c0_i32 = arith.constant 0 : i32
    %c0_i32_0 = arith.constant 0 : i32
    return %arg0, %c0_i32 : i32, i32
  }
  func.func @transform_1(%arg0: i32) -> (i32, i32) {
    %c0_i32 = arith.constant 0 : i32
    %c0_i32_0 = arith.constant 0 : i32
    return %arg0, %c0_i32 : i32, i32
  }
  func.func @transform_2(%arg0: i32) -> (i32, i32) {
    %c0_i32 = arith.constant 0 : i32
    %c0_i32_0 = arith.constant 0 : i32
    %c0_i32_1 = arith.constant 0 : i32
    return %c0_i32, %c0_i32_0 : i32, i32
  }
  func.func @transform_3(%arg0: i32) -> (i32, i32, i32) {
    %c0_i32 = arith.constant 0 : i32
    %c0_i32_0 = arith.constant 0 : i32
    %c0_i32_1 = arith.constant 0 : i32
    return %c0_i32, %arg0, %c0_i32_0 : i32, i32, i32
  }
}

</mosaic_0001>

<llo_original>
// kernel: tpu_custom_call.1
$region0: #{tpu_custom_call.1}
  #allocation0 [shape = 'u32[]', space=smem, size = 0x4, offset = 0x4, fixed_abs, tag = 'smem constant byte address 0x4 - core index']
  #allocation1 [shape = 'u32[144,128]{1,0:T(1,128)}', space=vmem, size = 0x12000, scoped, tag = 'internal scratch']
  %s0 = inlined_call_operand.hbm [shape: f32[16,16], index: 0, kind: input, shape index: {}]
  %s1 = inlined_call_operand.hbm [shape: f32[16,16], index: 1, kind: input, shape index: {}]
  %s2 = inlined_call_operand.hbm [shape: f32[1,128], index: 2, kind: output, shape index: {0}]
  %s3 = inlined_call_operand.hbm [shape: f32[8,16,16], index: 3, kind: output, shape index: {1}]
  %4 = xla_tuple %s2, %s3
  %s5 = sld [smem:[#allocation0]]
  $region38: #{tpu_custom_call.1} parent=0
    _
  %s7 = ssub.s32 1, %s5
  %s8 = scalar_select 0, %s7, %s5
  $region1: #{tpu_custom_call.1} parent=0
    #allocation2 [shape = 'u8[8192]{0}', space=vmem, size = 0x2000, scoped, tag = 'input window, operand 0, single buffered']
    #allocation3 [shape = 's32[1]{0}', space=sflag, size = 0x4, scoped, tag = 'scoped memory for tpu_custom_call.1']
    #allocation4 [shape = 's32[1]{0}', space=sflag, size = 0x4, scoped, tag = 'scoped memory for tpu_custom_call.1']
    #allocation5 [shape = 'u8[8192]{0}', space=vmem, size = 0x2000, scoped, tag = 'input window, operand 1, single buffered']
    #allocation6 [shape = 's32[1]{0}', space=sflag, size = 0x4, scoped, tag = 'scoped memory for tpu_custom_call.1']
    #allocation7 [shape = 'u8[512]{0}', space=vmem, size = 0x400, scoped, tag = 'output window, operand 0, single buffered']
    #allocation8 [shape = 'u8[65536]{0}', space=vmem, size = 0x10000, scoped, tag = 'output window, operand 1, single buffered']
    #allocation9 [shape = 's32[1]{0}', space=sflag, size = 0x4, scoped, tag = 'scoped memory for tpu_custom_call.1']
    %9 = vsyncpa [#allocation3], 0
    %10 = vsyncpa [#allocation6], 0
    %11 = vsyncpa [#allocation4], 0
    %12 = vsyncpa [#allocation9], 0
    // Predicated region
    $region2: #{tpu_custom_call.1} parent=1 // pred_check
      _
    $region3: #{tpu_custom_call.1} parent=1 // pred_check_branch
      %14 = sbr.rel (0) target = $region5
    $region4: #{tpu_custom_call.1} parent=1 // pred_region
      %s16 = ssub.s32 256, 256
      %17 = vsyncadd [#allocation3], %s16
      %s18 = sshll.u32 [#allocation2], 4
      %s19 = int_to_ptr.vmem [resolvable:$true] %s18
      %24 = dma.hbm_to_vmem [thread:$0]  %s0, 256, %s19, [#allocation3], 128, 128, 8
    $region5: #{tpu_custom_call.1} parent=1 // pred_fallthru
      _
    // Predicated region
    $region6: #{tpu_custom_call.1} parent=1 // pred_check
      _
    $region7: #{tpu_custom_call.1} parent=1 // pred_check_branch
      %26 = sbr.rel (0) target = $region9
    $region8: #{tpu_custom_call.1} parent=1 // pred_region
      %s28 = ssub.s32 256, 256
      %29 = vsyncadd [#allocation6], %s28
      %s30 = sshll.u32 [#allocation5], 4
      %s31 = int_to_ptr.vmem [resolvable:$true] %s30
      %36 = dma.hbm_to_vmem [thread:$0]  %s1, 256, %s31, [#allocation6], 128, 128, 8
    $region9: #{tpu_custom_call.1} parent=1 // pred_fallthru
      _
    // Predicated region
    $region10: #{tpu_custom_call.1} parent=1 // pred_check
      _
    $region11: #{tpu_custom_call.1} parent=1 // pred_check_branch
      %38 = sbr.rel (0) target = $region13
    $region12: #{tpu_custom_call.1} parent=1 // pred_region
      %39 = dma.done [#allocation3], 256
    $region13: #{tpu_custom_call.1} parent=1 // pred_fallthru
      _
    // Predicated region
    $region14: #{tpu_custom_call.1} parent=1 // pred_check
      _
    $region15: #{tpu_custom_call.1} parent=1 // pred_check_branch
      %41 = sbr.rel (0) target = $region17
    $region16: #{tpu_custom_call.1} parent=1 // pred_region
      %42 = dma.done [#allocation6], 256
    $region17: #{tpu_custom_call.1} parent=1 // pred_fallthru
      _
    %v43 = vld [vmem:[#allocation2] sm:$0xff]
    %v44 = vld [vmem:[#allocation2 + $0x8] sm:$0xff]
    %v45 = vld [vmem:[#allocation5] sm:$0xff]
    %v46 = vld [vmem:[#allocation5 + $0x8] sm:$0xff]
    %v47 = vlaneseq
    %v48 = vand.u32 %v47, 127
    %v49 = vcvt.s32.f32 %v48
    %v50 = vlaneseq
    %v51 = vshrl.u32 %v50, 7
    %v52 = vadd.s32 %v51, 8
    %s53 = smul.u32 0, 16
    %v54 = vstv %s53
    %v55 = vadd.s32 %v51, %v54
    %v56 = vadd.s32 %v52, %v54
    %v57 = vcvt.s32.f32 %v55
    %v58 = vcvt.s32.f32 %v56
    %v59 = vsub.f32 %v49, 334.081
    %v60 = vmul.f32 %v59, 0.0021711518
    %v61 = vsub.f32 %v57, 169.808
    %v62 = vsub.f32 %v58, 169.808
    %v63 = vmul.f32 %v61, 0.0021726473
    %v64 = vmul.f32 %v62, 0.0021726473
    %vm65 = vcmp.gt.f32.partialorder %v43, 0.0
    %vm66 = vcmp.gt.f32.partialorder %v44, 0.0
    %vm67 = vcmp.lt.f32.partialorder %v43, 65535.0
    %vm68 = vcmp.lt.f32.partialorder %v44, 65535.0
    %vm69 = vmand %vm65, %vm67
    %vm70 = vmand %vm66, %vm68
    %v71 = vmul.f32 %v43, %v60
    %v72 = vmul.f32 %v44, %v60
    %v73 = vmul.f32 %v43, %v63
    %v74 = vmul.f32 %v44, %v64
    %vm75 = vcmp.eq.f32.partialorder %v71, 0.0
    %vm76 = vcmp.eq.f32.partialorder %v72, 0.0
    %v77 = vsel %vm75, 1e-07, %v71
    %v78 = vsel %vm76, 1e-07, %v72
    %vm79 = vcmp.eq.f32.partialorder %v73, 0.0
    %vm80 = vcmp.eq.f32.partialorder %v74, 0.0
    %v81 = vsel %vm79, 1e-07, %v73
    %v82 = vsel %vm80, 1e-07, %v74
    %vm83 = vcmp.eq.f32.partialorder %v43, 0.0
    %vm84 = vcmp.eq.f32.partialorder %v44, 0.0
    %v85 = vsel %vm83, 1e-07, %v43
    %v86 = vsel %vm84, 1e-07, %v44
    %vm87 = vcmp.gt.f32.partialorder %v45, 0.0
    %vm88 = vcmp.gt.f32.partialorder %v46, 0.0
    %vm89 = vcmp.lt.f32.partialorder %v45, 65535.0
    %vm90 = vcmp.lt.f32.partialorder %v46, 65535.0
    %vm91 = vmand %vm87, %vm89
    %vm92 = vmand %vm88, %vm90
    %v93 = vmul.f32 %v45, %v60
    %v94 = vmul.f32 %v46, %v60
    %v95 = vmul.f32 %v45, %v63
    %v96 = vmul.f32 %v46, %v64
    %vm97 = vcmp.eq.f32.partialorder %v93, 0.0
    %vm98 = vcmp.eq.f32.partialorder %v94, 0.0
    %v99 = vsel %vm97, 1e-07, %v93
    %v100 = vsel %vm98, 1e-07, %v94
    %vm101 = vcmp.eq.f32.partialorder %v95, 0.0
    %vm102 = vcmp.eq.f32.partialorder %v96, 0.0
    %v103 = vsel %vm101, 1e-07, %v95
    %v104 = vsel %vm102, 1e-07, %v96
    %vm105 = vcmp.eq.f32.partialorder %v45, 0.0
    %vm106 = vcmp.eq.f32.partialorder %v46, 0.0
    %v107 = vsel %vm105, 1e-07, %v45
    %v108 = vsel %vm106, 1e-07, %v46
    %vm109 = vmand %vm69, %vm91
    %vm110 = vmand %vm70, %vm92
    %v111 = vsel %vm109, 1, 0
    %v112 = vsel %vm110, 1, 0
    %v113 = vcvt.s32.f32 %v111
    %v114 = vcvt.s32.f32 %v112
    %vm115 = vcmask 130048
    %v116 = vsel %vm115, %v113, 0.0
    %v117 = vsel %vm115, %v114, 0.0
    %v118 = vadd.f32 %v116, %v117
    %119 = vadd.xlane.f32.xlu0 %v118
    %v120 = vpop.xlane.xlu0 %119
    %v121 = vrot.slane %v120, 4
    %v122 = vadd.f32 %v120, %v121
    %v123 = vrot.slane %v122, 2
    %v124 = vadd.f32 %v122, %v123
    %v125 = vrot.slane %v124, 1
    %v126 = vadd.f32 %v124, %v125
    %s127 = vtos %v126
    %v128 = vsub.f32 %v77, %v99
    %v129 = vsub.f32 %v78, %v100
    %v130 = vmul.f32 %v128, %v128
    %v131 = vmul.f32 %v129, %v129
    %v132 = vsel %vm109, %v130, 0.0
    %v133 = vsel %vm110, %v131, 0.0
    %v134 = vsel %vm115, %v132, 0.0
    %v135 = vsel %vm115, %v133, 0.0
    %v136 = vadd.f32 %v134, %v135
    %137 = vadd.xlane.f32.xlu0 %v136
    %v138 = vpop.xlane.xlu0 %137
    %v139 = vrot.slane %v138, 4
    %v140 = vadd.f32 %v138, %v139
    %v141 = vrot.slane %v140, 2
    %v142 = vadd.f32 %v140, %v141
    %v143 = vrot.slane %v142, 1
    %v144 = vadd.f32 %v142, %v143
    %s145 = vtos %v144
    %v146 = vsub.f32 %v81, %v103
    %v147 = vsub.f32 %v82, %v104
    %v148 = vmul.f32 %v146, %v146
    %v149 = vmul.f32 %v147, %v147
    %v150 = vsel %vm109, %v148, 0.0
    %v151 = vsel %vm110, %v149, 0.0
    %v152 = vsel %vm115, %v150, 0.0
    %v153 = vsel %vm115, %v151, 0.0
    %v154 = vadd.f32 %v152, %v153
    %155 = vadd.xlane.f32.xlu0 %v154
    %v156 = vpop.xlane.xlu0 %155
    %v157 = vrot.slane %v156, 4
    %v158 = vadd.f32 %v156, %v157
    %v159 = vrot.slane %v158, 2
    %v160 = vadd.f32 %v158, %v159
    %v161 = vrot.slane %v160, 1
    %v162 = vadd.f32 %v160, %v161
    %s163 = vtos %v162
    %v164 = vsub.f32 %v85, %v107
    %v165 = vsub.f32 %v86, %v108
    %v166 = vmul.f32 %v164, %v164
    %v167 = vmul.f32 %v165, %v165
    %v168 = vsel %vm109, %v166, 0.0
    %v169 = vsel %vm110, %v167, 0.0
    %v170 = vsel %vm115, %v168, 0.0
    %v171 = vsel %vm115, %v169, 0.0
    %v172 = vadd.f32 %v170, %v171
    %173 = vadd.xlane.f32.xlu0 %v172
    %v174 = vpop.xlane.xlu0 %173
    %v175 = vrot.slane %v174, 4
    %v176 = vadd.f32 %v174, %v175
    %v177 = vrot.slane %v176, 2
    %v178 = vadd.f32 %v176, %v177
    %v179 = vrot.slane %v178, 1
    %v180 = vadd.f32 %v178, %v179
    %s181 = vtos %v180
    %v182 = vsel %vm109, %v85, 1.0
    %v183 = vsel %vm110, %v86, 1.0
    %v184 = vand.u32 2147483647, %v182
    %v185 = vand.u32 2147483647, %v183
    %v186 = vlog2.pop %v184
    %v187 = vmul.f32 %v186, 0.6931472
    %v188 = vlog2.pop %v185
    %v189 = vmul.f32 %v188, 0.6931472
    %v190 = vsel %vm109, %v107, 1.0
    %v191 = vsel %vm110, %v108, 1.0
    %v192 = vand.u32 2147483647, %v190
    %v193 = vand.u32 2147483647, %v191
    %v194 = vlog2.pop %v192
    %v195 = vmul.f32 %v194, 0.6931472
    %v196 = vlog2.pop %v193
    %v197 = vmul.f32 %v196, 0.6931472
    %v198 = vsub.f32 %v187, %v195
    %v199 = vsub.f32 %v189, %v197
    %v200 = vmul.f32 %v198, %v198
    %v201 = vmul.f32 %v199, %v199
    %v202 = vsel %vm109, %v200, 0.0
    %v203 = vsel %vm110, %v201, 0.0
    %v204 = vsel %vm115, %v202, 0.0
    %v205 = vsel %vm115, %v203, 0.0
    %v206 = vadd.f32 %v204, %v205
    %207 = vadd.xlane.f32.xlu0 %v206
    %v208 = vpop.xlane.xlu0 %207
    %v209 = vrot.slane %v208, 4
    %v210 = vadd.f32 %v208, %v209
    %v211 = vrot.slane %v210, 2
    %v212 = vadd.f32 %v210, %v211
    %v213 = vrot.slane %v212, 1
    %v214 = vadd.f32 %v212, %v213
    %s215 = vtos %v214
    %v216 = vsel %vm91, %v99, 0.0
    %v217 = vsel %vm92, %v100, 0.0
    %v218 = vsel %vm91, %v103, 0.0
    %v219 = vsel %vm92, %v104, 0.0
    %v220 = vsel %vm91, %v107, 0.0
    %v221 = vsel %vm92, %v108, 0.0
    %v222 = vsel %vm115, %v216, -inf
    %v223 = vsel %vm115, %v217, -inf
    %v224 = vmax.f32 %v222, %v223
    %225 = vmax.xlane.f32.xlu0 %v224
    %v226 = vpop.xlane.xlu0 %225
    %v227 = vrot.slane %v226, 4
    %v228 = vmax.f32 %v226, %v227
    %v229 = vrot.slane %v228, 2
    %v230 = vmax.f32 %v228, %v229
    %v231 = vrot.slane %v230, 1
    %v232 = vmax.f32 %v230, %v231
    %s233 = vtos %v232
    %v234 = vstv %s233
    %v235 = vsel %vm115, %v218, -inf
    %v236 = vsel %vm115, %v219, -inf
    %v237 = vmax.f32 %v235, %v236
    %238 = vmax.xlane.f32.xlu0 %v237
    %v239 = vpop.xlane.xlu0 %238
    %v240 = vrot.slane %v239, 4
    %v241 = vmax.f32 %v239, %v240
    %v242 = vrot.slane %v241, 2
    %v243 = vmax.f32 %v241, %v242
    %v244 = vrot.slane %v243, 1
    %v245 = vmax.f32 %v243, %v244
    %s246 = vtos %v245
    %v247 = vstv %s246
    %v248 = vsel %vm115, %v220, -inf
    %v249 = vsel %vm115, %v221, -inf
    %v250 = vmax.f32 %v248, %v249
    %251 = vmax.xlane.f32.xlu0 %v250
    %v252 = vpop.xlane.xlu0 %251
    %v253 = vrot.slane %v252, 4
    %v254 = vmax.f32 %v252, %v253
    %v255 = vrot.slane %v254, 2
    %v256 = vmax.f32 %v254, %v255
    %v257 = vrot.slane %v256, 1
    %v258 = vmax.f32 %v256, %v257
    %s259 = vtos %v258
    %v260 = vstv %s259
    %v261 = vmax.f32 %v247, %v260
    %v262 = vmax.f32 %v234, %v261
    %vm263 = vcmp.eq.s32.totalorder %v48, 0
    %v264 = vstv %s127
    %v265 = vsel %vm263, %v264, 0.0
    %v266 = vadd.f32 %v265, 0.0
    %vm267 = vcmp.eq.s32.totalorder %v48, 1
    %v268 = vstv %s145
    %v269 = vsel %vm267, %v268, 0.0
    %v270 = vadd.f32 %v266, %v269
    %vm271 = vcmp.eq.s32.totalorder %v48, 2
    %v272 = vstv %s163
    %v273 = vsel %vm271, %v272, 0.0
    %v274 = vadd.f32 %v270, %v273
    %vm275 = vcmp.eq.s32.totalorder %v48, 3
    %v276 = vstv %s181
    %v277 = vsel %vm275, %v276, 0.0
    %v278 = vadd.f32 %v274, %v277
    %vm279 = vcmp.eq.s32.totalorder %v48, 4
    %v280 = vstv %s215
    %v281 = vsel %vm279, %v280, 0.0
    %v282 = vadd.f32 %v278, %v281
    %vm283 = vcmp.eq.s32.totalorder %v48, 5
    %v284 = vsel %vm283, %v262, 0.0
    %v285 = vadd.f32 %v282, %v284
    %p286 = scmp.eq.s32.totalorder 0, 0
    // Predicated region
    $region18: #{tpu_custom_call.1} parent=1 // pred_check
      %p287 = pneg %p286
    $region19: #{tpu_custom_call.1} parent=1 // pred_check_branch
      %289 = sbr.rel (%p287) target = $region21
    $region20: #{tpu_custom_call.1} parent=1 // pred_region
      %v290 = vsel %vm283, -inf, 0.0
      %291 = vst [vmem:[#allocation7] sm:$0x1] %v290
    $region21: #{tpu_custom_call.1} parent=1 // pred_fallthru
      _
    %v292 = vld [vmem:[#allocation7] sm:$0x1]
    %v293 = vmax.f32 %v292, %v285
    %v294 = vadd.f32 %v292, %v285
    %v295 = vsel %vm283, %v293, %v294
    %296 = vst [vmem:[#allocation7] sm:$0x1] %v295
    %297 = vst.msk [vmem:[#allocation8] sm:$0xff] %vm115, %v216
    %298 = vst.msk [vmem:[#allocation8 + $0x8] sm:$0xff] %vm115, %v217
    %s299 = scalar_lea.vmem [#allocation8], 16
    %300 = vst.msk [vmem:[%s299] sm:$0xff] %vm115, %v218
    %301 = vst.msk [vmem:[%s299 + $0x8] sm:$0xff] %vm115, %v219
    %s302 = scalar_lea.vmem [#allocation8], 32
    %303 = vst.msk [vmem:[%s302] sm:$0xff] %vm115, %v220
    %304 = vst.msk [vmem:[%s302 + $0x8] sm:$0xff] %vm115, %v221
    %s305 = scalar_lea.vmem [#allocation8], 48
    %306 = vst.msk [vmem:[%s305] sm:$0xff] %vm115, 1.0
    %307 = vst.msk [vmem:[%s305 + $0x8] sm:$0xff] %vm115, 1.0
    %s308 = scalar_lea.vmem [#allocation8], 64
    %309 = vst.msk [vmem:[%s308] sm:$0xff] %vm115, 0.0
    %310 = vst.msk [vmem:[%s308 + $0x8] sm:$0xff] %vm115, 0.0
    %s311 = scalar_lea.vmem [#allocation8], 80
    %312 = vst.msk [vmem:[%s311] sm:$0xff] %vm115, 0.0
    %313 = vst.msk [vmem:[%s311 + $0x8] sm:$0xff] %vm115, 0.0
    %s314 = scalar_lea.vmem [#allocation8], 96
    %315 = vst.msk [vmem:[%s314] sm:$0xff] %vm115, 0.0
    %316 = vst.msk [vmem:[%s314 + $0x8] sm:$0xff] %vm115, 0.0
    %s317 = scalar_lea.vmem [#allocation8], 112
    %318 = vst.msk [vmem:[%s317] sm:$0xff] %vm115, 0.0
    %319 = vst.msk [vmem:[%s317 + $0x8] sm:$0xff] %vm115, 0.0
    // Predicated region
    $region22: #{tpu_custom_call.1} parent=1 // pred_check
      _
    $region23: #{tpu_custom_call.1} parent=1 // pred_check_branch
      %321 = sbr.rel (0) target = $region25
    $region24: #{tpu_custom_call.1} parent=1 // pred_region
      %s323 = ssub.s32 16, 16
      %324 = vsyncadd [#allocation4], %s323
      %s326 = sshll.u32 [#allocation7], 4
      %s327 = int_to_ptr.vmem [resolvable:$true] %s326
      %329 = dma.vmem_to_hbm [thread:$0]  %s327, 16, %s2, [#allocation4]
    $region25: #{tpu_custom_call.1} parent=1 // pred_fallthru
      _
    // Predicated region
    $region26: #{tpu_custom_call.1} parent=1 // pred_check
      _
    $region27: #{tpu_custom_call.1} parent=1 // pred_check_branch
      %331 = sbr.rel (0) target = $region29
    $region28: #{tpu_custom_call.1} parent=1 // pred_region
      %s333 = ssub.s32 2048, 2048
      %334 = vsyncadd [#allocation9], %s333
      %s335 = sshll.u32 [#allocation8], 4
      %s336 = int_to_ptr.vmem [resolvable:$true] %s335
      %341 = dma.vmem_to_hbm [thread:$0]  %s336, 2048, %s3, [#allocation9], 128, 128, 8
    $region29: #{tpu_custom_call.1} parent=1 // pred_fallthru
      _
    // Predicated region
    $region30: #{tpu_custom_call.1} parent=1 // pred_check
      _
    $region31: #{tpu_custom_call.1} parent=1 // pred_check_branch
      %343 = sbr.rel (0) target = $region33
    $region32: #{tpu_custom_call.1} parent=1 // pred_region
      %344 = dma.done [#allocation4], 16
    $region33: #{tpu_custom_call.1} parent=1 // pred_fallthru
      _
    // Predicated region
    $region34: #{tpu_custom_call.1} parent=1 // pred_check
      _
    $region35: #{tpu_custom_call.1} parent=1 // pred_check_branch
      %346 = sbr.rel (0) target = $region37
    $region36: #{tpu_custom_call.1} parent=1 // pred_region
      %347 = dma.done [#allocation9], 2048
    $region37: #{tpu_custom_call.1} parent=1 // pred_fallthru
      _
    %348 = vsyncpa [#allocation3], 1
    %349 = vsyncpa [#allocation6], 1
    %350 = vsyncpa [#allocation4], 1
    %351 = vsyncpa [#allocation9], 1

</llo_original>
